<compile_context>
chip_gen: v5e
topology: v5e:2x2
jax: 0.10.0
libtpu: 0.0.40
codegen_flags: <defaults>
</compile_context>

<pallas_src>
import math

import jax
import jax.numpy as jnp
from jax.experimental import pallas as pl
from jax.experimental.pallas import tpu as pltpu


def _copy_kernel(x_ref, o_ref):
    # Identity copy of one lane-dense block.
    o_ref[...] = x_ref[...]


def _slab_layout(total, itemsize, target_block_bytes=2 << 20):
    """Pick a lane-dense 2D slab (rows, cols) and a row-block size.

    cols is a large multiple of 128 (unmasked, lane-dense vst), rows * cols ==
    total, and block_rows is a multiple of 8 (or the full row extent) sized to
    ~target_block_bytes per block.
    """
    if total % 128 != 0:
        # Small / odd element counts: a single full-array block is legal
        # (block_shape == array dims) and keeps the store path simple.
        return (1, total), 1

    # Prefer a lane width that still leaves >= 8 sublane rows.
    cols = None
    for c in (4096, 2048, 1024, 512, 256, 128):
        if total % c == 0 and total // c >= 8:
            cols = c
            break
    if cols is None:
        for c in (4096, 2048, 1024, 512, 256, 128):
            if total % c == 0:
                cols = c
                break
    rows = total // cols

    max_rows = max(1, target_block_bytes // (cols * itemsize))
    if rows <= max_rows or rows < 8:
        return (rows, cols), rows

    block_rows = max(8, (min(rows, max_rows) // 8) * 8)
    # Prefer a block that evenly divides rows (every block full, unmasked).
    while block_rows > 8 and rows % block_rows != 0:
        block_rows -= 8
    if rows % block_rows != 0:
        block_rows = rows  # fall back to one full-extent block
    return (rows, cols), block_rows


def reshape_copy(x, new_shape):
    """Materializing reshape: lane-dense Pallas identity copy + metadata reshape."""
    total = math.prod(x.shape)
    (rows, cols), block_rows = _slab_layout(total, jnp.dtype(x.dtype).itemsize)
    x2d = x.reshape(rows, cols)  # metadata-only slab view

    y2d = pl.pallas_call(
        _copy_kernel,
        out_shape=jax.ShapeDtypeStruct((rows, cols), x.dtype),
        grid=(rows // block_rows,),
        in_specs=[pl.BlockSpec((block_rows, cols), lambda i: (i, 0))],
        out_specs=pl.BlockSpec((block_rows, cols), lambda i: (i, 0)),
        input_output_aliases={0: 0},  # allow XLA to alias/donate the buffer
        compiler_params=pltpu.CompilerParams(
            dimension_semantics=("parallel",),
            vmem_limit_bytes=32 * 1024 * 1024,
        ),
    )(x2d)

    return y2d.reshape(new_shape)


class Reshape:
    """JAX/Pallas port of the PyTorch Reshape module.

    forward(x) == x.view((x.shape[0],) + self.shape)

    Default path is a metadata-only reshape (no kernel, no HBM round-trip),
    which exactly matches torch .view semantics.  Pass materialize=True to
    force a contiguity-materializing copy through the Pallas kernel.
    """

    def __init__(self, *args):
        self.shape = tuple(int(a) for a in args)
        # Precompute target element count once (keeps __call__ light & jit-friendly).
        self._numel = math.prod(self.shape) if -1 not in self.shape else -1

    def __call__(self, x, *, materialize=False):
        batch = x.shape[0]
        if self._numel >= 0 and math.prod(x.shape[1:]) != self._numel:
            raise ValueError("Reshape: element count mismatch")
        new_shape = (batch,) + self.shape
        if not materialize:
            # Pure metadata — the fast path recommended by the perf review.
            return x.reshape(new_shape)
        return reshape_copy(x, new_shape)


if __name__ == "__main__":
    key = jax.random.PRNGKey(0)
    # Small NCHW input consistent with typical use of Reshape.
    x = jax.random.normal(key, (2, 4, 16, 16), dtype=jnp.float32)

    mod = Reshape(4, 16 * 16)

    # Reference (torch .view semantics) — metadata only.
    ref = x.reshape((x.shape[0],) + mod.shape)

    # Fast path (default): metadata-only reshape, no kernel launched.
    y_fast = mod(x)

    # Pallas kernel path: lane-dense identity-copy kernel, run once.
    y_kernel = mod(x, materialize=True)
    y_kernel = jax.block_until_ready(y_kernel)

    assert y_fast.shape == (2, 4, 256)
    assert y_kernel.shape == (2, 4, 256)
    assert y_kernel.dtype == x.dtype
    assert bool(jnp.all(y_fast == ref))
    assert bool(jnp.all(y_kernel == ref))

    print("KERNEL_OK")
</pallas_src>

<mosaic_0001>
module attributes {stable_mosaic.version = 11 : i64} {
  func.func @_copy_kernel(%arg0: i32, %arg1: memref<8x256xf32, #tpu.memory_space<vmem>>, %arg2: memref<8x256xf32, #tpu.memory_space<vmem>>) attributes {dimension_semantics = [#tpu.dimension_semantics<parallel>], iteration_bounds = array<i64: 1>, scalar_prefetch = 0 : i64, scratch_operands = 0 : i64, tpu.core_type = #tpu.core_type<tc>, window_params = [{transform_indices = @transform_0, window_bounds = array<i64: 8, 256>}, {transform_indices = @transform_1, window_bounds = array<i64: 8, 256>}]} {
    %c0 = arith.constant 0 : index
    %c0_0 = arith.constant 0 : index
    %0 = vector.load %arg1[%c0, %c0_0] : memref<8x256xf32, #tpu.memory_space<vmem>>, vector<8x256xf32>
    %c0_1 = arith.constant 0 : index
    %c0_2 = arith.constant 0 : index
    %1 = vector.load %arg2[%c0_1, %c0_2] : memref<8x256xf32, #tpu.memory_space<vmem>>, vector<8x256xf32>
    tpu.vector_store %arg2[%c0_1, %c0_2], %0 {strides = array<i32>} : memref<8x256xf32, #tpu.memory_space<vmem>>, vector<8x256xf32>,
    return
  }
  func.func @transform_0(%arg0: i32) -> (i32, i32) {
    %c0_i32 = arith.constant 0 : i32
    %c0_i32_0 = arith.constant 0 : i32
    return %arg0, %c0_i32 : i32, i32
  }
  func.func @transform_1(%arg0: i32) -> (i32, i32) {
    %c0_i32 = arith.constant 0 : i32
    %c0_i32_0 = arith.constant 0 : i32
    return %arg0, %c0_i32 : i32, i32
  }
}

</mosaic_0001>

<llo_original>
// kernel: tpu_custom_call.1
$region0: #{tpu_custom_call.1}
  #allocation0 [shape = 'u32[]', space=smem, size = 0x4, offset = 0x4, fixed_abs, tag = 'smem constant byte address 0x4 - core index']
  #allocation1 [shape = 'u32[72,128]{1,0:T(1,128)}', space=vmem, size = 0x9000, scoped, tag = 'internal scratch']
  %s0 = inlined_call_operand.hbm [shape: f32[8,256], index: 0, kind: input, shape index: {}, may-alias: {0,1}]
  %s1 = inlined_call_operand.hbm [shape: f32[8,256], index: 1, kind: output, shape index: {}, may-alias: {0,1}]
  %s2 = sld [smem:[#allocation0]]
  $region18: #{tpu_custom_call.1} parent=0
    _
  %s4 = ssub.s32 1, %s2
  %s5 = scalar_select 0, %s4, %s2
  $region1: #{tpu_custom_call.1} parent=0
    #allocation2 [shape = 'u8[8192]{0}', space=vmem, size = 0x2000, scoped, tag = 'input window, operand 0, single buffered']
    #allocation3 [shape = 's32[1]{0}', space=sflag, size = 0x4, scoped, tag = 'scoped memory for tpu_custom_call.1']
    #allocation4 [shape = 's32[1]{0}', space=sflag, size = 0x4, scoped, tag = 'scoped memory for tpu_custom_call.1']
    #allocation5 [shape = 'u8[8192]{0}', space=vmem, size = 0x2000, scoped, tag = 'output window, operand 0, single buffered']
    %6 = vsyncpa [#allocation3], 0
    %7 = vsyncpa [#allocation4], 0
    // Predicated region
    $region2: #{tpu_custom_call.1} parent=1 // pred_check
      _
    $region3: #{tpu_custom_call.1} parent=1 // pred_check_branch
      %9 = sbr.rel (0) target = $region5
    $region4: #{tpu_custom_call.1} parent=1 // pred_region
      %11 = vsyncadd [#allocation3], 0
      %s13 = sshll.u32 %s0, 4
      %s14 = int_to_ptr.hbm [resolvable:$true] %s13
      %s15 = sshll.u32 [#allocation2], 4
      %s16 = int_to_ptr.vmem [resolvable:$true] %s15
      %18 = dma.hbm_to_vmem [thread:$0]  %s14, 256, %s16, [#allocation3]
    $region5: #{tpu_custom_call.1} parent=1 // pred_fallthru
      _
    // Predicated region
    $region6: #{tpu_custom_call.1} parent=1 // pred_check
      _
    $region7: #{tpu_custom_call.1} parent=1 // pred_check_branch
      %20 = sbr.rel (0) target = $region9
    $region8: #{tpu_custom_call.1} parent=1 // pred_region
      %22 = dma.done [#allocation3], 256
    $region9: #{tpu_custom_call.1} parent=1 // pred_fallthru
      _
    %v23 = vld [vmem:[#allocation2] sm:$0xff]
    %v24 = vld [vmem:[#allocation2 + $0x8] sm:$0xff]
    %25 = vst [vmem:[#allocation5] sm:$0xff] %v23
    %26 = vst [vmem:[#allocation5 + $0x8] sm:$0xff] %v24
    // Predicated region
    $region10: #{tpu_custom_call.1} parent=1 // pred_check
      _
    $region11: #{tpu_custom_call.1} parent=1 // pred_check_branch
      %28 = sbr.rel (0) target = $region13
    $region12: #{tpu_custom_call.1} parent=1 // pred_region
      %30 = vsyncadd [#allocation4], 0
      %s32 = sshll.u32 [#allocation5], 4
      %s33 = int_to_ptr.vmem [resolvable:$true] %s32
      %s34 = sshll.u32 %s1, 4
      %s35 = int_to_ptr.hbm [resolvable:$true] %s34
      %37 = dma.vmem_to_hbm [thread:$0]  %s33, 256, %s35, [#allocation4]
    $region13: #{tpu_custom_call.1} parent=1 // pred_fallthru
      _
    // Predicated region
    $region14: #{tpu_custom_call.1} parent=1 // pred_check
      _
    $region15: #{tpu_custom_call.1} parent=1 // pred_check_branch
      %39 = sbr.rel (0) target = $region17
    $region16: #{tpu_custom_call.1} parent=1 // pred_region
      %41 = dma.done [#allocation4], 256
    $region17: #{tpu_custom_call.1} parent=1 // pred_fallthru
      _
    %42 = vsyncpa [#allocation3], 1
    %43 = vsyncpa [#allocation4], 1

</llo_original>
